<compile_context>
chip_gen: v6e
topology: v6e:2x2x1
jax: 0.10.0
libtpu: 0.0.40
codegen_flags: <defaults>
</compile_context>

<pallas_src>
import functools

import jax
import jax.numpy as jnp
from jax.experimental import pallas as pl
from jax.experimental.pallas import tpu as pltpu

_LANE = 128


def _round_up(x, m):
    return ((x + m - 1) // m) * m


def _pick_tile(dim, align, cap):
    """Largest multiple of `align` <= cap that evenly divides `dim`.

    `dim` is already a multiple of `align`, so this never re-introduces
    padding (worst case it falls back to `align`).
    """
    if dim <= cap:
        return dim
    t = (cap // align) * align
    while t > align:
        if dim % t == 0:
            return t
        t -= align
    return align


def _linear_kernel_acc_out(x_ref, w_ref, b_ref, o_ref):
    # f32 output: accumulate directly into the output tile (resident across
    # the K grid axis because out_specs ignores k). No scratch, no final copy.
    k = pl.program_id(2)

    @pl.when(k == 0)
    def _init():
        o_ref[...] = jnp.zeros_like(o_ref)

    o_ref[...] += jnp.dot(
        x_ref[...], w_ref[...], preferred_element_type=jnp.float32
    )

    @pl.when(k == pl.num_programs(2) - 1)
    def _epilogue():
        o_ref[...] += b_ref[...]


def _linear_kernel_scratch(x_ref, w_ref, b_ref, o_ref, acc_ref):
    # Non-f32 output: f32 VMEM accumulator, fused bias add + cast at the end.
    k = pl.program_id(2)

    @pl.when(k == 0)
    def _init():
        acc_ref[...] = jnp.zeros_like(acc_ref)

    acc_ref[...] += jnp.dot(
        x_ref[...], w_ref[...], preferred_element_type=jnp.float32
    )

    @pl.when(k == pl.num_programs(2) - 1)
    def _epilogue():
        o_ref[...] = (acc_ref[...] + b_ref[...]).astype(o_ref.dtype)


@functools.partial(jax.jit, static_argnames=("out_dim", "use_pallas"))
def linear_forward(x, weight_t_pad, bias_pad, out_dim, use_pallas=None):
    """y = x @ W_T + b for the LinearLayer module.

    weight_t_pad: (Kp, Np) pre-transposed, pre-padded weight (Kp/Np multiples
                  of 128, padding is zero).  bias_pad: (1, Np) f32, zero pad.
    """
    B, K = x.shape
    Kp, Np = weight_t_pad.shape
    assert Kp == _round_up(K, _LANE) and Np >= out_dim
    out_dtype = x.dtype
    compute_dtype = weight_t_pad.dtype
    itemsize = jnp.dtype(compute_dtype).itemsize

    # --- tiny-problem bypass: fixed pallas_call overhead dominates ---------
    if use_pallas is None:
        use_pallas = (B * K * out_dim) >= (1 << 18)
    if not use_pallas:
        y = jnp.dot(
            x.astype(compute_dtype),
            weight_t_pad[:K, :out_dim],
            preferred_element_type=jnp.float32,
        )
        return (y + bias_pad[0, :out_dim]).astype(out_dtype)

    # --- tile selection (tiles divide the padded dims: zero wasted work) ---
    m_align = 8 * (4 // itemsize)            # 8 for f32 operands, 16 for bf16
    Mp = _round_up(B, m_align)
    tm = _pick_tile(Mp, m_align, 512)
    m_tiles = Mp // tm

    n_cap = 512
    if m_tiles == 1 and Np >= 2 * _LANE:
        # keep >= 2 output tiles on the parallel axes so both v7x TCs are fed
        n_cap = min(n_cap, max(_LANE, (Np // 2) // _LANE * _LANE))
    tn = _pick_tile(Np, _LANE, n_cap)

    tk = _pick_tile(Kp, _LANE, 1024)

    # --- pad + cast activations only (weight/bias already padded at init) --
    xk = x.astype(compute_dtype)
    if (Mp, Kp) != (B, K):
        xk = jnp.pad(xk, ((0, Mp - B), (0, Kp - K)))

    # --- kernel variant / scratch -------------------------------------------
    if out_dtype == jnp.float32:
        kernel = _linear_kernel_acc_out
        scratch = []
        acc_bytes = 0
    else:
        kernel = _linear_kernel_scratch
        scratch = [pltpu.VMEM((tm, tn), jnp.float32)]
        acc_bytes = tm * tn * 4

    # --- scheduling hints ----------------------------------------------------
    cost = pl.CostEstimate(
        flops=2 * Mp * Np * Kp,
        bytes_accessed=(Mp * Kp + Kp * Np) * itemsize
        + Mp * Np * jnp.dtype(out_dtype).itemsize
        + Np * 4,
        transcendentals=0,
    )
    vmem_est = (
        2 * (tm * tk + tk * tn + tn) * itemsize     # double-buffered inputs
        + 2 * tm * tn * jnp.dtype(out_dtype).itemsize
        + acc_bytes
    )
    vmem_limit = None
    if vmem_est > (14 << 20):                       # only raise when needed
        vmem_limit = min(int(vmem_est * 3 // 2) + (2 << 20), 96 << 20)

    out = pl.pallas_call(
        kernel,
        out_shape=jax.ShapeDtypeStruct((Mp, Np), out_dtype),
        grid_spec=pltpu.PrefetchScalarGridSpec(
            num_scalar_prefetch=0,
            grid=(Mp // tm, Np // tn, Kp // tk),
            in_specs=[
                pl.BlockSpec((tm, tk), lambda i, j, k: (i, k)),   # x
                pl.BlockSpec((tk, tn), lambda i, j, k: (k, j)),   # W_T
                pl.BlockSpec((1, tn), lambda i, j, k: (0, j)),    # bias
            ],
            out_specs=pl.BlockSpec((tm, tn), lambda i, j, k: (i, j)),
            scratch_shapes=scratch,
        ),
        compiler_params=pltpu.CompilerParams(
            dimension_semantics=("parallel", "parallel", "arbitrary"),
            vmem_limit_bytes=vmem_limit,
        ),
        cost_estimate=cost,
    )(xk, weight_t_pad, bias_pad)

    if (Mp, Np) != (B, out_dim):
        out = out[:B, :out_dim]
    return out


def init_linear_params(key, in_dim, out_dim, param_dtype=jnp.float32):
    """xavier_normal_ weight (std = sqrt(2/(fan_in+fan_out))), zero bias.

    The weight is created in the transposed (in_dim, out_dim) layout AND
    zero-padded once to lane-aligned (Kp, Np); the bias is stored padded as
    (1, Np) f32.  The forward pass never touches/pads the weight again.
    """
    std = (2.0 / (in_dim + out_dim)) ** 0.5
    w_t = jax.random.normal(key, (in_dim, out_dim), dtype=jnp.float32) * std
    Kp = _round_up(in_dim, _LANE)
    Np = _round_up(out_dim, _LANE)
    w_t_pad = (
        jnp.zeros((Kp, Np), dtype=param_dtype)
        .at[:in_dim, :out_dim]
        .set(w_t.astype(param_dtype))
    )
    b_pad = jnp.zeros((1, Np), dtype=jnp.float32)
    return w_t_pad, b_pad


if __name__ == "__main__":
    key = jax.random.PRNGKey(0)
    k_w, k_x, k_w2, k_x2 = jax.random.split(key, 4)

    # --- 1) small demo (module-typical sizes), kernel path forced ----------
    in_dim, out_dim, batch = 32, 16, 8
    w_t, b = init_linear_params(k_w, in_dim, out_dim)
    b = b.at[0, :out_dim].set(0.25)     # non-zero bias to exercise epilogue
    x = jax.random.normal(k_x, (batch, in_dim), dtype=jnp.float32)

    y = linear_forward(x, w_t, b, out_dim, use_pallas=True)
    jax.block_until_ready(y)

    y_ref = x @ w_t[:in_dim, :out_dim] + b[0, :out_dim]
    assert y.shape == (batch, out_dim)
    assert jnp.allclose(y, y_ref, atol=1e-5), "mismatch vs reference (small)"

    # --- 2) multi-tile check: exercises K accumulation + multiple N tiles --
    in_dim2, out_dim2, batch2 = 1280, 384, 24
    w_t2, b2 = init_linear_params(k_w2, in_dim2, out_dim2)
    b2 = b2.at[0, :out_dim2].set(0.5)
    x2 = jax.random.normal(k_x2, (batch2, in_dim2), dtype=jnp.float32)

    y2 = linear_forward(x2, w_t2, b2, out_dim2)
    jax.block_until_ready(y2)

    y2_ref = x2 @ w_t2[:in_dim2, :out_dim2] + b2[0, :out_dim2]
    assert y2.shape == (batch2, out_dim2)
    assert jnp.allclose(y2, y2_ref, atol=1e-3, rtol=1e-3), \
        "mismatch vs reference (tiled)"

    # --- 3) bf16-operand path (f32 accumulate / f32 bias), gated by flag ---
    w_t3, b3 = init_linear_params(k_w2, in_dim2, out_dim2,
                                  param_dtype=jnp.bfloat16)
    b3 = b3.at[0, :out_dim2].set(0.5)
    y3 = linear_forward(x2, w_t3, b3, out_dim2, use_pallas=True)
    jax.block_until_ready(y3)

    x2_bf = x2.astype(jnp.bfloat16).astype(jnp.float32)
    w3_f32 = w_t3[:in_dim2, :out_dim2].astype(jnp.float32)
    y3_ref = x2_bf @ w3_f32 + b3[0, :out_dim2]
    assert jnp.allclose(y3, y3_ref, atol=5e-3, rtol=5e-3), \
        "mismatch vs reference (bf16 operands)"

    print("KERNEL_OK")
</pallas_src>

<mosaic_0001>
module attributes {stable_mosaic.version = 11 : i64} {
  func.func @_linear_kernel_acc_out(%arg0: i32, %arg1: i32, %arg2: i32, %arg3: memref<8x128xf32, #tpu.memory_space<vmem>>, %arg4: memref<128x128xf32, #tpu.memory_space<vmem>>, %arg5: memref<1x128xf32, #tpu.memory_space<vmem>>, %arg6: memref<8x128xf32, #tpu.memory_space<vmem>>) attributes {dimension_semantics = [#tpu.dimension_semantics<parallel>, #tpu.dimension_semantics<parallel>, #tpu.dimension_semantics<arbitrary>], iteration_bounds = array<i64: 1, 1, 1>, scalar_prefetch = 0 : i64, scratch_operands = 0 : i64, tpu.core_type = #tpu.core_type<tc>, window_params = [{transform_indices = @transform_0, window_bounds = array<i64: 8, 128>}, {transform_indices = @transform_1, window_bounds = array<i64: 128, 128>}, {transform_indices = @transform_2, window_bounds = array<i64: 1, 128>}, {transform_indices = @transform_3, window_bounds = array<i64: 8, 128>}]} {
    %c0_i32 = arith.constant 0 : i32
    %0 = arith.cmpi eq, %arg2, %c0_i32 : i32
    %1 = arith.extui %0 : i1 to i32
    %c0_i32_0 = arith.constant 0 : i32
    %2 = arith.cmpi ne, %1, %c0_i32_0 : i32
    scf.if %2 {
      %cst_10 = arith.constant 0.000000e+00 : f32
      %12 = vector.broadcast %cst_10 : f32 to vector<8x128xf32>
      %c0_11 = arith.constant 0 : index
      %c0_12 = arith.constant 0 : index
      %13 = vector.load %arg6[%c0_11, %c0_12] : memref<8x128xf32, #tpu.memory_space<vmem>>, vector<8x128xf32>
      tpu.vector_store %arg6[%c0_11, %c0_12], %12 {strides = array<i32>} : memref<8x128xf32, #tpu.memory_space<vmem>>, vector<8x128xf32>,
    } else {
    }
    %c0 = arith.constant 0 : index
    %c0_1 = arith.constant 0 : index
    %3 = vector.load %arg6[%c0, %c0_1] : memref<8x128xf32, #tpu.memory_space<vmem>>, vector<8x128xf32>
    %c0_2 = arith.constant 0 : index
    %c0_3 = arith.constant 0 : index
    %4 = vector.load %arg3[%c0_2, %c0_3] : memref<8x128xf32, #tpu.memory_space<vmem>>, vector<8x128xf32>
    %c0_4 = arith.constant 0 : index
    %c0_5 = arith.constant 0 : index
    %5 = vector.load %arg4[%c0_4, %c0_5] : memref<128x128xf32, #tpu.memory_space<vmem>>, vector<128x128xf32>
    %cst = arith.constant dense<0.000000e+00> : vector<8x128xf32>
    %6 = tpu.matmul %4, %5, %cst {dimension_numbers = #tpu.dot_dimension_numbers<[1], [0], [0], [1], [0, 0, 1, 1], [], []>} : vector<8x128xf32>, vector<128x128xf32>, vector<8x128xf32> -> vector<8x128xf32>
    %7 = arith.addf %3, %6 : vector<8x128xf32>
    %c0_6 = arith.constant 0 : index
    %c0_7 = arith.constant 0 : index
    %8 = vector.load %arg6[%c0_6, %c0_7] : memref<8x128xf32, #tpu.memory_space<vmem>>, vector<8x128xf32>
    tpu.vector_store %arg6[%c0_6, %c0_7], %7 {strides = array<i32>} : memref<8x128xf32, #tpu.memory_space<vmem>>, vector<8x128xf32>,
    %c0_i32_8 = arith.constant 0 : i32
    %9 = arith.cmpi eq, %arg2, %c0_i32_8 : i32
    %10 = arith.extui %9 : i1 to i32
    %c0_i32_9 = arith.constant 0 : i32
    %11 = arith.cmpi ne, %10, %c0_i32_9 : i32
    scf.if %11 {
      %c0_10 = arith.constant 0 : index
      %c0_11 = arith.constant 0 : index
      %12 = vector.load %arg6[%c0_10, %c0_11] : memref<8x128xf32, #tpu.memory_space<vmem>>, vector<8x128xf32>
      %c0_12 = arith.constant 0 : index
      %c0_13 = arith.constant 0 : index
      %13 = vector.load %arg5[%c0_12, %c0_13] : memref<1x128xf32, #tpu.memory_space<vmem>>, vector<1x128xf32>
      %14 = vector.broadcast %13 : vector<1x128xf32> to vector<8x128xf32>
      %15 = arith.addf %12, %14 : vector<8x128xf32>
      %c0_14 = arith.constant 0 : index
      %c0_15 = arith.constant 0 : index
      %16 = vector.load %arg6[%c0_14, %c0_15] : memref<8x128xf32, #tpu.memory_space<vmem>>, vector<8x128xf32>
      tpu.vector_store %arg6[%c0_14, %c0_15], %15 {strides = array<i32>} : memref<8x128xf32, #tpu.memory_space<vmem>>, vector<8x128xf32>,
    } else {
    }
    return
  }
  func.func @transform_0(%arg0: i32, %arg1: i32, %arg2: i32) -> (i32, i32) {
    %c0_i32 = arith.constant 0 : i32
    return %arg0, %arg2 : i32, i32
  }
  func.func @transform_1(%arg0: i32, %arg1: i32, %arg2: i32) -> (i32, i32) {
    %c0_i32 = arith.constant 0 : i32
    return %arg2, %arg1 : i32, i32
  }
  func.func @transform_2(%arg0: i32, %arg1: i32, %arg2: i32) -> (i32, i32) {
    %c0_i32 = arith.constant 0 : i32
    %c0_i32_0 = arith.constant 0 : i32
    return %c0_i32, %arg1 : i32, i32
  }
  func.func @transform_3(%arg0: i32, %arg1: i32, %arg2: i32) -> (i32, i32) {
    %c0_i32 = arith.constant 0 : i32
    return %arg0, %arg1 : i32, i32
  }
}

</mosaic_0001>

<llo_original>
// kernel: linear_forward.1
$region0: #{linear_forward.1}
  #allocation0 [shape = 'u32[]', space=smem, size = 0x4, offset = 0x4, fixed_abs, tag = 'smem constant byte address 0x4 - core index']
  #allocation1 [shape = 'u32[144,128]{1,0:T(1,128)}', space=vmem, size = 0x12000, scoped, tag = 'internal scratch']
  %s0 = inlined_call_operand.vmem [shape: f32[8,128], index: 0, kind: input, shape index: {}]
  %s1 = inlined_call_operand.hbm [shape: f32[128,128], index: 1, kind: input, shape index: {}]
  %s2 = inlined_call_operand.vmem [shape: f32[1,128], index: 2, kind: input, shape index: {}]
  %s3 = inlined_call_operand.hbm [shape: f32[8,128], index: 3, kind: output, shape index: {}]
  %s4 = sld [smem:[#allocation0]]
  $region34: #{linear_forward.1} parent=0
    _
  %s6 = ssub.s32 1, %s4
  %s7 = scalar_select 0, %s6, %s4
  $region1: #{linear_forward.1} parent=0
    #allocation2 [shape = 'u8[65536]{0}', space=vmem, size = 0x10000, scoped, tag = 'input window, operand 1, single buffered']
    #allocation3 [shape = 's32[1]{0}', space=sflag, size = 0x4, scoped, tag = 'scoped memory for linear_forward.1']
    #allocation4 [shape = 's32[1]{0}', space=sflag, size = 0x4, scoped, tag = 'scoped memory for linear_forward.1']
    #allocation5 [shape = 'u8[4096]{0}', space=vmem, size = 0x1000, scoped, tag = 'output window, operand 0, single buffered']
    %8 = vsyncpa [#allocation3], 0
    %9 = vsyncpa [#allocation4], 0
    // Predicated region
    $region2: #{linear_forward.1} parent=1 // pred_check
      _
    $region3: #{linear_forward.1} parent=1 // pred_check_branch
      %11 = sbr.rel (0) target = $region5
    $region4: #{linear_forward.1} parent=1 // pred_region
      _
    $region5: #{linear_forward.1} parent=1 // pred_fallthru
      _
    // Predicated region
    $region6: #{linear_forward.1} parent=1 // pred_check
      _
    $region7: #{linear_forward.1} parent=1 // pred_check_branch
      %13 = sbr.rel (0) target = $region9
    $region8: #{linear_forward.1} parent=1 // pred_region
      %s15 = ssub.s32 2048, 2048
      %16 = vsyncadd [#allocation3], %s15
      %s17 = sshll.u32 [#allocation2], 4
      %s18 = int_to_ptr.vmem [resolvable:$true] %s17
      %23 = dma.hbm_to_vmem [thread:$0]  %s1, 2048, %s18, [#allocation3], 128, 128, 8
    $region9: #{linear_forward.1} parent=1 // pred_fallthru
      _
    // Predicated region
    $region10: #{linear_forward.1} parent=1 // pred_check
      _
    $region11: #{linear_forward.1} parent=1 // pred_check_branch
      %25 = sbr.rel (0) target = $region13
    $region12: #{linear_forward.1} parent=1 // pred_region
      _
    $region13: #{linear_forward.1} parent=1 // pred_fallthru
      _
    // Predicated region
    $region14: #{linear_forward.1} parent=1 // pred_check
      _
    $region15: #{linear_forward.1} parent=1 // pred_check_branch
      %27 = sbr.rel (0) target = $region17
    $region16: #{linear_forward.1} parent=1 // pred_region
      %28 = dma.done [#allocation3], 2048
    $region17: #{linear_forward.1} parent=1 // pred_fallthru
      _
    %p29 = scmp.eq.s32.totalorder 0, 0
    // Predicated region
    $region18: #{linear_forward.1} parent=1 // pred_check
      %p30 = pneg %p29
    $region19: #{linear_forward.1} parent=1 // pred_check_branch
      %32 = sbr.rel (%p30) target = $region21
    $region20: #{linear_forward.1} parent=1 // pred_region
      %33 = vst [vmem:[#allocation5] sm:$0xff] 0.0
    $region21: #{linear_forward.1} parent=1 // pred_fallthru
      _
    %v34 = vld [vmem:[#allocation5] sm:$0xff]
    %v35 = vld [vmem:[%s0] sm:$0xff]
    %v36 = vld [vmem:[#allocation2] sm:$0xff]
    %v37 = vld [vmem:[#allocation2 + $0x8] sm:$0xff]
    %v38 = vld [vmem:[#allocation2 + $0x10] sm:$0xff]
    %v39 = vld [vmem:[#allocation2 + $0x18] sm:$0xff]
    %v40 = vld [vmem:[#allocation2 + $0x20] sm:$0xff]
    %v41 = vld [vmem:[#allocation2 + $0x28] sm:$0xff]
    %v42 = vld [vmem:[#allocation2 + $0x30] sm:$0xff]
    %v43 = vld [vmem:[#allocation2 + $0x38] sm:$0xff]
    %v44 = vld [vmem:[#allocation2 + $0x40] sm:$0xff]
    %v45 = vld [vmem:[#allocation2 + $0x48] sm:$0xff]
    %v46 = vld [vmem:[#allocation2 + $0x50] sm:$0xff]
    %v47 = vld [vmem:[#allocation2 + $0x58] sm:$0xff]
    %v48 = vld [vmem:[#allocation2 + $0x60] sm:$0xff]
    %v49 = vld [vmem:[#allocation2 + $0x68] sm:$0xff]
    %v50 = vld [vmem:[#allocation2 + $0x70] sm:$0xff]
    %v51 = vld [vmem:[#allocation2 + $0x78] sm:$0xff]
    %52 = vmatprep.subr.mxu0 0.0
    %53 = vmatpush1.msra.mxu0 %v51
    %54 = vmatprep.subr.mxu0 0.0
    %55 = vmatpush1.msra.mxu0 %v50
    %56 = vmatprep.subr.mxu0 0.0
    %57 = vmatpush1.msra.mxu0 %v49
    %58 = vmatprep.subr.mxu0 0.0
    %59 = vmatpush1.msra.mxu0 %v48
    %60 = vmatprep.subr.mxu0 0.0
    %61 = vmatpush1.msra.mxu0 %v47
    %62 = vmatprep.subr.mxu0 0.0
    %63 = vmatpush1.msra.mxu0 %v46
    %64 = vmatprep.subr.mxu0 0.0
    %65 = vmatpush1.msra.mxu0 %v45
    %66 = vmatprep.subr.mxu0 0.0
    %67 = vmatpush1.msra.mxu0 %v44
    %68 = vmatprep.subr.mxu0 0.0
    %69 = vmatpush1.msra.mxu0 %v43
    %70 = vmatprep.subr.mxu0 0.0
    %71 = vmatpush1.msra.mxu0 %v42
    %72 = vmatprep.subr.mxu0 0.0
    %73 = vmatpush1.msra.mxu0 %v41
    %74 = vmatprep.subr.mxu0 0.0
    %75 = vmatpush1.msra.mxu0 %v40
    %76 = vmatprep.subr.mxu0 0.0
    %77 = vmatpush1.msra.mxu0 %v39
    %78 = vmatprep.subr.mxu0 0.0
    %79 = vmatpush1.msra.mxu0 %v38
    %80 = vmatprep.subr.mxu0 0.0
    %81 = vmatpush1.msra.mxu0 %v37
    %82 = vmatprep.subr.mxu0 0.0
    %83 = vmatpush1.msra.mxu0 %v36
    %84 = vmatprep.subr.mxu0 0.0
    %85 = vmatpush2.msra.mxu0 0.0
    %86 = vmatprep.subr.mxu0 0.0
    %87 = vmatpush2.msra.mxu0 0.0
    %88 = vmatprep.subr.mxu0 0.0
    %89 = vmatpush2.msra.mxu0 0.0
    %90 = vmatprep.subr.mxu0 0.0
    %91 = vmatpush2.msra.mxu0 0.0
    %92 = vmatprep.subr.mxu0 0.0
    %93 = vmatpush2.msra.mxu0 0.0
    %94 = vmatprep.subr.mxu0 0.0
    %95 = vmatpush2.msra.mxu0 0.0
    %96 = vmatprep.subr.mxu0 0.0
    %97 = vmatpush2.msra.mxu0 0.0
    %98 = vmatprep.subr.mxu0 0.0
    %99 = vmatpush2.msra.mxu0 0.0
    %100 = vmatprep.subr.mxu0 0.0
    %101 = vmatpush2.msra.mxu0 0.0
    %102 = vmatprep.subr.mxu0 0.0
    %103 = vmatpush2.msra.mxu0 0.0
    %104 = vmatprep.subr.mxu0 0.0
    %105 = vmatpush2.msra.mxu0 0.0
    %106 = vmatprep.subr.mxu0 0.0
    %107 = vmatpush2.msra.mxu0 0.0
    %108 = vmatprep.subr.mxu0 0.0
    %109 = vmatpush2.msra.mxu0 0.0
    %110 = vmatprep.subr.mxu0 0.0
    %111 = vmatpush2.msra.mxu0 0.0
    %112 = vmatprep.subr.mxu0 0.0
    %113 = vmatpush2.msra.mxu0 0.0
    %114 = vmatprep.subr.mxu0 0.0
    %115 = vmatpush2.msra.mxu0 0.0
    %116 = vmatprep.mubr.f32.mxu0 0.0
    %117 = vmatmul.mubr.f32.gmra.mxu0 %v35
    %v118 = vpop.f32.mrf.mxu0
    %v119 = vadd.f32 0.0, %v118
    %v120 = vpop.f32.mrf.mxu0
    %121 = vdwg.mxu0
    %v122 = vadd.f32 %v34, %v119
    %123 = vst [vmem:[#allocation5] sm:$0xff] %v122
    // Predicated region
    $region22: #{linear_forward.1} parent=1 // pred_check
      %p124 = pneg %p29
    $region23: #{linear_forward.1} parent=1 // pred_check_branch
      %126 = sbr.rel (%p124) target = $region25
    $region24: #{linear_forward.1} parent=1 // pred_region
      %v127 = vld [vmem:[#allocation5] sm:$0xff]
      %v128 = vld [vmem:[%s2] sm:$0x1]
      %v130 = vlaneseq
      %v131 = vshrl.u32 %v130, 7
      %v132 = vsub.s32 0, %v131
      %v133 = vrot.slane %v128, %v132
      %v135 = vadd.f32 %v127, %v133
      %136 = vst [vmem:[#allocation5] sm:$0xff] %v135
    $region25: #{linear_forward.1} parent=1 // pred_fallthru
      _
    // Predicated region
    $region26: #{linear_forward.1} parent=1 // pred_check
      _
    $region27: #{linear_forward.1} parent=1 // pred_check_branch
      %138 = sbr.rel (0) target = $region29
    $region28: #{linear_forward.1} parent=1 // pred_region
      %s140 = ssub.s32 128, 128
      %141 = vsyncadd [#allocation4], %s140
      %s143 = sshll.u32 [#allocation5], 4
      %s144 = int_to_ptr.vmem [resolvable:$true] %s143
      %146 = dma.vmem_to_hbm [thread:$0]  %s144, 128, %s3, [#allocation4]
    $region29: #{linear_forward.1} parent=1 // pred_fallthru
      _
    // Predicated region
    $region30: #{linear_forward.1} parent=1 // pred_check
      _
    $region31: #{linear_forward.1} parent=1 // pred_check_branch
      %148 = sbr.rel (0) target = $region33
    $region32: #{linear_forward.1} parent=1 // pred_region
      %149 = dma.done [#allocation4], 128
    $region33: #{linear_forward.1} parent=1 // pred_fallthru
      _
    %150 = vsyncpa [#allocation3], 1
    %151 = vsyncpa [#allocation4], 1

</llo_original>
